<compile_context>
chip_gen: v7x
topology: tpu7x:2x2x1
jax: 0.10.0
libtpu: 0.0.40
codegen_flags: <defaults>
</compile_context>

<pallas_src>
import jax
import jax.numpy as jnp
from jax.experimental import pallas as pl
from jax.experimental.pallas import tpu as pltpu

# ---- model dimensions (consistent with the 2D C3M model) -------------------
NUM_DIM_X = 4
NUM_DIM_CONTROL = 2
HIDDEN = 32
BATCH = 8

# packed activation rows: [x (nx) ; xe (nx) ; uref (nc) ; ones (1)]
F_IN = 2 * NUM_DIM_X + NUM_DIM_CONTROL + 1

MAX_TB = 2048            # max lanes per block (multiple of 128); sweep 2048-4096
_SINGLE_BLOCK_MAX = 512  # below this, one block (launch overhead dominates anyway)


def _round_up(v, m):
    return -(-v // m) * m


def u_func_kernel(act_ref, p1_ref, w2s_ref, out_ref):
    """One batch tile: u^T = w2s @ tanh(p1 @ act) + uref^T  (all algebra pre-folded)."""
    act = act_ref[...]                                   # (F_IN, TB)
    # single fused layer-1 matmul: rows [:H] = x0 branch, rows [H:] = xe branch,
    # bias b1 applied via the ones-row of `act`.  One tanh stream to the EUP.
    t = jnp.tanh(jnp.dot(p1_ref[...], act, preferred_element_type=jnp.float32))  # (2H, TB)
    uref_t = act[2 * NUM_DIM_X:2 * NUM_DIM_X + NUM_DIM_CONTROL, :]               # (nc, TB)
    # w2s = [-0.8*W2^T | 0.8*W2^T]: branch diff + 0.8 scale folded into one dot.
    out_ref[...] = jnp.dot(w2s_ref[...], t, preferred_element_type=jnp.float32) + uref_t


def pack_params(W1, b1, W2, b2=None):
    """Pack MLP params ONCE (init-time) into the kernel's fused, transposed layout.

    b2 is accepted for API parity but dropped: it cancels exactly in w1_xe - w1_x0.
    """
    del b2
    W1 = jnp.asarray(W1, jnp.float32)                    # (2*nx, H)
    b1 = jnp.asarray(b1, jnp.float32).reshape(-1, 1)     # (H, 1)
    W2 = jnp.asarray(W2, jnp.float32)                    # (H, nc)
    H = W1.shape[1]

    a1t = W1[:NUM_DIM_X].T                               # (H, nx)  W1a^T (acts on x)
    b1t = W1[NUM_DIM_X:].T                               # (H, nx)  W1b^T (acts on xe)
    zx = jnp.zeros((H, NUM_DIM_X), jnp.float32)
    zu = jnp.zeros((H, NUM_DIM_CONTROL), jnp.float32)    # zero cols over the uref rows

    row_x0 = jnp.concatenate([a1t, zx, zu, b1], axis=1)  # -> s       = W1a^T x + b1
    row_xe = jnp.concatenate([a1t, b1t, zu, b1], axis=1) # -> s + W1b^T xe + b1
    p1 = jnp.concatenate([row_x0, row_xe], axis=0)       # (2H, F_IN)

    w2s = jnp.concatenate([-0.8 * W2.T, 0.8 * W2.T], axis=1)  # (nc, 2H)
    return p1, w2s


def _batch_tiling(bs):
    """Pick (tile_width, padded_batch): lane-dense tiles, >=4 blocks when large."""
    bs128 = _round_up(max(bs, 1), 128)
    if bs128 <= _SINGLE_BLOCK_MAX:
        return bs128, bs128
    # keep >=~4 blocks so v7x's two TensorCores each get >=2 (sharding + overlap)
    tb = min(MAX_TB, max(128, _round_up(bs128 // 4, 128)))
    bs_pad = _round_up(bs, tb)
    return tb, bs_pad


@jax.jit
def u_func_forward(x, xe, uref, p1, w2s):
    """x, xe: (bs, nx, 1); uref: (bs, nc, 1)  ->  (bs, nc, 1)."""
    bs = x.shape[0]
    tb, bs_pad = _batch_tiling(bs)

    # Pack + transpose activations so batch rides the lane axis: (F_IN, bs_pad).
    feats = jnp.concatenate(
        [jnp.squeeze(x, -1), jnp.squeeze(xe, -1), jnp.squeeze(uref, -1),
         jnp.ones((bs, 1), jnp.float32)],
        axis=1).astype(jnp.float32)                       # (bs, F_IN)
    act = feats.T                                         # (F_IN, bs)
    if bs_pad != bs:
        # zero-padded columns (incl. the ones-row) yield exact zeros and are sliced off
        act = jnp.pad(act, ((0, 0), (0, bs_pad - bs)))

    out_t = pl.pallas_call(
        u_func_kernel,
        out_shape=jax.ShapeDtypeStruct((NUM_DIM_CONTROL, bs_pad), jnp.float32),
        grid=(bs_pad // tb,),
        in_specs=[
            pl.BlockSpec((F_IN, tb), lambda i: (0, i)),   # one packed activation DMA / block
            pl.BlockSpec(p1.shape, lambda i: (0, 0)),     # fused layer-1 weights+bias (resident)
            pl.BlockSpec(w2s.shape, lambda i: (0, 0)),    # fused layer-2 weights (resident)
        ],
        out_specs=pl.BlockSpec((NUM_DIM_CONTROL, tb), lambda i: (0, i)),
        compiler_params=pltpu.CompilerParams(
            dimension_semantics=("parallel",)),           # shards batch blocks on v7x's 2 TCs
    )(act, p1, w2s)

    return out_t[:, :bs].T[..., None]                     # (bs, nc, 1)


def reference_forward(x, xe, uref, W1, b1, W2, b2):
    """Pure-JAX reference of the original (two-branch, with b2) computation."""
    x2 = jnp.squeeze(x, -1)
    xe2 = jnp.squeeze(xe, -1)
    uref2 = jnp.squeeze(uref, -1)

    def mlp(inp):
        return jnp.tanh(inp @ W1 + b1) @ W2 + b2

    w1_xe = mlp(jnp.concatenate([x2, xe2], axis=1))
    w1_x0 = mlp(jnp.concatenate([x2, jnp.zeros_like(xe2)], axis=1))
    return (0.8 * (w1_xe - w1_x0) + uref2)[..., None]


if __name__ == "__main__":
    key = jax.random.PRNGKey(0)
    k_x, k_xe, k_u, k_w1, k_b1, k_w2, k_b2 = jax.random.split(key, 7)

    # Inputs (shapes as the PyTorch module expects: trailing singleton dim).
    x = jax.random.normal(k_x, (BATCH, NUM_DIM_X, 1), dtype=jnp.float32)
    xe = jax.random.normal(k_xe, (BATCH, NUM_DIM_X, 1), dtype=jnp.float32)
    uref = jax.random.normal(k_u, (BATCH, NUM_DIM_CONTROL, 1), dtype=jnp.float32)

    # model_u_w1 parameters (Linear -> Tanh -> Linear).
    W1 = 0.1 * jax.random.normal(k_w1, (2 * NUM_DIM_X, HIDDEN), dtype=jnp.float32)
    b1 = 0.1 * jax.random.normal(k_b1, (HIDDEN,), dtype=jnp.float32)
    W2 = 0.1 * jax.random.normal(k_w2, (HIDDEN, NUM_DIM_CONTROL), dtype=jnp.float32)
    b2 = 0.1 * jax.random.normal(k_b2, (NUM_DIM_CONTROL,), dtype=jnp.float32)

    p1, w2s = pack_params(W1, b1, W2, b2)   # init-time packing (b2 cancels, dropped)

    # Small batch (single lane-dense block).
    u = jax.block_until_ready(u_func_forward(x, xe, uref, p1, w2s))
    u_ref = reference_forward(x, xe, uref, W1, b1, W2, b2)
    assert u.shape == (BATCH, NUM_DIM_CONTROL, 1), u.shape
    assert jnp.allclose(u, u_ref, atol=1e-5, rtol=1e-5), "mismatch vs reference (small batch)"

    # Larger batch: exercises multi-block grid, >=2 blocks, and lane padding.
    BS_BIG = 600
    kx2, kxe2, ku2 = jax.random.split(jax.random.PRNGKey(1), 3)
    xb = jax.random.normal(kx2, (BS_BIG, NUM_DIM_X, 1), dtype=jnp.float32)
    xeb = jax.random.normal(kxe2, (BS_BIG, NUM_DIM_X, 1), dtype=jnp.float32)
    urefb = jax.random.normal(ku2, (BS_BIG, NUM_DIM_CONTROL, 1), dtype=jnp.float32)
    ub = jax.block_until_ready(u_func_forward(xb, xeb, urefb, p1, w2s))
    ub_ref = reference_forward(xb, xeb, urefb, W1, b1, W2, b2)
    assert ub.shape == (BS_BIG, NUM_DIM_CONTROL, 1), ub.shape
    assert jnp.allclose(ub, ub_ref, atol=1e-5, rtol=1e-5), "mismatch vs reference (large batch)"

    print("KERNEL_OK")
</pallas_src>

<mosaic_0001>
module attributes {stable_mosaic.version = 11 : i64} {
  func.func @u_func_kernel(%arg0: i32, %arg1: memref<11x128xf32, #tpu.memory_space<vmem>>, %arg2: memref<64x11xf32, #tpu.memory_space<vmem>>, %arg3: memref<2x64xf32, #tpu.memory_space<vmem>>, %arg4: memref<2x128xf32, #tpu.memory_space<vmem>>) attributes {dimension_semantics = [#tpu.dimension_semantics<parallel>], iteration_bounds = array<i64: 1>, scalar_prefetch = 0 : i64, scratch_operands = 0 : i64, tpu.core_type = #tpu.core_type<tc>, window_params = [{transform_indices = @transform_0, window_bounds = array<i64: 11, 128>}, {pipeline_mode = #tpu.pipeline_mode<synchronous>, transform_indices = @transform_1, window_bounds = array<i64: 64, 11>}, {pipeline_mode = #tpu.pipeline_mode<synchronous>, transform_indices = @transform_2, window_bounds = array<i64: 2, 64>}, {transform_indices = @transform_3, window_bounds = array<i64: 2, 128>}]} {
    %c0 = arith.constant 0 : index
    %c0_0 = arith.constant 0 : index
    %0 = vector.load %arg1[%c0, %c0_0] : memref<11x128xf32, #tpu.memory_space<vmem>>, vector<11x128xf32>
    %c0_1 = arith.constant 0 : index
    %c0_2 = arith.constant 0 : index
    %1 = vector.load %arg2[%c0_1, %c0_2] : memref<64x11xf32, #tpu.memory_space<vmem>>, vector<64x11xf32>
    %cst = arith.constant dense<0.000000e+00> : vector<64x128xf32>
    %2 = tpu.matmul %1, %0, %cst {dimension_numbers = #tpu.dot_dimension_numbers<[1], [0], [0], [1], [0, 0, 1, 1], [], []>} : vector<64x11xf32>, vector<11x128xf32>, vector<64x128xf32> -> vector<64x128xf32>
    %3 = math.tanh %2 : vector<64x128xf32>
    %4 = vector.extract_strided_slice %0 {offsets = [8, 0], sizes = [2, 128], strides = [1, 1]} : vector<11x128xf32> to vector<2x128xf32>
    %c0_3 = arith.constant 0 : index
    %c0_4 = arith.constant 0 : index
    %5 = vector.load %arg3[%c0_3, %c0_4] : memref<2x64xf32, #tpu.memory_space<vmem>>, vector<2x64xf32>
    %cst_5 = arith.constant dense<0.000000e+00> : vector<2x128xf32>
    %6 = tpu.matmul %5, %3, %cst_5 {dimension_numbers = #tpu.dot_dimension_numbers<[1], [0], [0], [1], [0, 0, 1, 1], [], []>} : vector<2x64xf32>, vector<64x128xf32>, vector<2x128xf32> -> vector<2x128xf32>
    %7 = arith.addf %6, %4 : vector<2x128xf32>
    %c0_6 = arith.constant 0 : index
    %c0_7 = arith.constant 0 : index
    %8 = vector.load %arg4[%c0_6, %c0_7] : memref<2x128xf32, #tpu.memory_space<vmem>>, vector<2x128xf32>
    tpu.vector_store %arg4[%c0_6, %c0_7], %7 {strides = array<i32>} : memref<2x128xf32, #tpu.memory_space<vmem>>, vector<2x128xf32>,
    return
  }
  func.func @transform_0(%arg0: i32) -> (i32, i32) {
    %c0_i32 = arith.constant 0 : i32
    %c0_i32_0 = arith.constant 0 : i32
    return %c0_i32, %arg0 : i32, i32
  }
  func.func @transform_1(%arg0: i32) -> (i32, i32) {
    %c0_i32 = arith.constant 0 : i32
    %c0_i32_0 = arith.constant 0 : i32
    %c0_i32_1 = arith.constant 0 : i32
    return %c0_i32, %c0_i32_0 : i32, i32
  }
  func.func @transform_2(%arg0: i32) -> (i32, i32) {
    %c0_i32 = arith.constant 0 : i32
    %c0_i32_0 = arith.constant 0 : i32
    %c0_i32_1 = arith.constant 0 : i32
    return %c0_i32, %c0_i32_0 : i32, i32
  }
  func.func @transform_3(%arg0: i32) -> (i32, i32) {
    %c0_i32 = arith.constant 0 : i32
    %c0_i32_0 = arith.constant 0 : i32
    return %c0_i32, %arg0 : i32, i32
  }
}

</mosaic_0001>

<llo_original>
// kernel: u_func_forward.1
$region0: #{u_func_forward.1}
  #allocation0 [shape = 'u32[]', space=smem, size = 0x4, offset = 0x4, fixed_abs, tag = 'smem constant byte address 0x4 - core index']
  #allocation1 [shape = 'u32[144,128]{1,0:T(1,128)}', space=vmem, size = 0x12000, scoped, tag = 'internal scratch']
  %s0 = inlined_call_operand.vmem [shape: f32[11,128], index: 0, kind: input, shape index: {}]
  %s1 = inlined_call_operand.vmem [shape: f32[64,11], index: 1, kind: input, shape index: {}]
  %s2 = inlined_call_operand.vmem [shape: f32[2,64], index: 2, kind: input, shape index: {}]
  %s3 = inlined_call_operand.hbm [shape: f32[2,128], index: 3, kind: output, shape index: {}]
  %s4 = sld [smem:[#allocation0]]
  $region22: #{u_func_forward.1} parent=0
    _
  %s6 = ssub.s32 1, %s4
  %s7 = scalar_select 0, %s6, %s4
  $region1: #{u_func_forward.1} parent=0
    #allocation2 [shape = 'u8[1024]{0}', space=vmem, size = 0x400, scoped, tag = 'output window, operand 0, single buffered']
    #allocation3 [shape = 's32[1]{0}', space=sflag, size = 0x4, scoped, tag = 'scoped memory for u_func_forward.1']
    %8 = vsyncpa [#allocation3], 0
    // Predicated region
    $region2: #{u_func_forward.1} parent=1 // pred_check
      _
    $region3: #{u_func_forward.1} parent=1 // pred_check_branch
      %10 = sbr.rel (0) target = $region5
    $region4: #{u_func_forward.1} parent=1 // pred_region
      _
    $region5: #{u_func_forward.1} parent=1 // pred_fallthru
      _
    // Predicated region
    $region6: #{u_func_forward.1} parent=1 // pred_check
      _
    $region7: #{u_func_forward.1} parent=1 // pred_check_branch
      %12 = sbr.rel (0) target = $region9
    $region8: #{u_func_forward.1} parent=1 // pred_region
      _
    $region9: #{u_func_forward.1} parent=1 // pred_fallthru
      _
    // Predicated region
    $region10: #{u_func_forward.1} parent=1 // pred_check
      _
    $region11: #{u_func_forward.1} parent=1 // pred_check_branch
      %14 = sbr.rel (0) target = $region13
    $region12: #{u_func_forward.1} parent=1 // pred_region
      _
    $region13: #{u_func_forward.1} parent=1 // pred_fallthru
      _
    %v15 = vld [vmem:[%s0] sm:$0xff]
    %v16 = vld [vmem:[%s0 + $0x8] sm:$0x7]
    %v17 = vld [vmem:[%s1] sm:$0xff]
    %v18 = vld [vmem:[%s1 + $0x8] sm:$0xff]
    %v19 = vld [vmem:[%s1 + $0x10] sm:$0xff]
    %v20 = vld [vmem:[%s1 + $0x18] sm:$0xff]
    %v21 = vld [vmem:[%s1 + $0x20] sm:$0xff]
    %v22 = vld [vmem:[%s1 + $0x28] sm:$0xff]
    %v23 = vld [vmem:[%s1 + $0x30] sm:$0xff]
    %v24 = vld [vmem:[%s1 + $0x38] sm:$0xff]
    %vm25 = vcmask 89088
    %v27 = vsel %vm25, %v17, 0
    %v30 = vsel %vm25, %v18, 0
    %v33 = vsel %vm25, %v19, 0
    %v36 = vsel %vm25, %v20, 0
    %v39 = vsel %vm25, %v21, 0
    %v42 = vsel %vm25, %v22, 0
    %v45 = vsel %vm25, %v23, 0
    %v48 = vsel %vm25, %v24, 0
    %vm50 = vcmask 1042432
    %v52 = vsel %vm50, %v16, 0
    %54 = vmatprep.subr.mxu0 0.0
    %55 = vmatpush1.msra.mxu0 %v15
    %56 = vmatprep.subr.mxu0 0.0
    %57 = vmatpush1.msra.mxu0 %v52
    %58 = vmatprep.subr.mxu0 0.0
    %59 = vmatpush1.msra.mxu0 0.0
    %60 = vmatprep.subr.mxu0 0.0
    %61 = vmatpush1.msra.mxu0 0.0
    %62 = vmatprep.subr.mxu0 0.0
    %63 = vmatpush1.msra.mxu0 0.0
    %64 = vmatprep.subr.mxu0 0.0
    %65 = vmatpush1.msra.mxu0 0.0
    %66 = vmatprep.subr.mxu0 0.0
    %67 = vmatpush1.msra.mxu0 0.0
    %68 = vmatprep.subr.mxu0 0.0
    %69 = vmatpush1.msra.mxu0 0.0
    %70 = vmatprep.subr.mxu0 0.0
    %71 = vmatpush1.msra.mxu0 0.0
    %72 = vmatprep.subr.mxu0 0.0
    %73 = vmatpush1.msra.mxu0 0.0
    %74 = vmatprep.subr.mxu0 0.0
    %75 = vmatpush1.msra.mxu0 0.0
    %76 = vmatprep.subr.mxu0 0.0
    %77 = vmatpush1.msra.mxu0 0.0
    %78 = vmatprep.subr.mxu0 0.0
    %79 = vmatpush1.msra.mxu0 0.0
    %80 = vmatprep.subr.mxu0 0.0
    %81 = vmatpush1.msra.mxu0 0.0
    %82 = vmatprep.subr.mxu0 0.0
    %83 = vmatpush1.msra.mxu0 0.0
    %84 = vmatprep.subr.mxu0 0.0
    %85 = vmatpush1.msra.mxu0 0.0
    %86 = vmatprep.subr.mxu0 0.0
    %87 = vmatpush1.msra.mxu0 0.0
    %88 = vmatprep.subr.mxu0 0.0
    %89 = vmatpush1.msra.mxu0 0.0
    %90 = vmatprep.subr.mxu0 0.0
    %91 = vmatpush1.msra.mxu0 0.0
    %92 = vmatprep.subr.mxu0 0.0
    %93 = vmatpush1.msra.mxu0 0.0
    %94 = vmatprep.subr.mxu0 0.0
    %95 = vmatpush1.msra.mxu0 0.0
    %96 = vmatprep.subr.mxu0 0.0
    %97 = vmatpush1.msra.mxu0 0.0
    %98 = vmatprep.subr.mxu0 0.0
    %99 = vmatpush1.msra.mxu0 0.0
    %100 = vmatprep.subr.mxu0 0.0
    %101 = vmatpush1.msra.mxu0 0.0
    %102 = vmatprep.subr.mxu0 0.0
    %103 = vmatpush1.msra.mxu0 0.0
    %104 = vmatprep.subr.mxu0 0.0
    %105 = vmatpush1.msra.mxu0 0.0
    %106 = vmatprep.subr.mxu0 0.0
    %107 = vmatpush1.msra.mxu0 0.0
    %108 = vmatprep.subr.mxu0 0.0
    %109 = vmatpush1.msra.mxu0 0.0
    %110 = vmatprep.subr.mxu0 0.0
    %111 = vmatpush1.msra.mxu0 0.0
    %112 = vmatprep.subr.mxu0 0.0
    %113 = vmatpush1.msra.mxu0 0.0
    %114 = vmatprep.subr.mxu0 0.0
    %115 = vmatpush1.msra.mxu0 0.0
    %116 = vmatprep.subr.mxu0 0.0
    %117 = vmatpush1.msra.mxu0 0.0
    %118 = vmatprep.mubr.f32.mxu0 0.0
    %119 = vmatmul.mubr.f32.gmra.mrb[0].mxu0 %v27
    %v120 = vpop.f32.mrb[0].mxu0
    %v121 = vadd.f32 0.0, %v120
    %v122 = vpop.f32.mrb[0].mxu0
    %123 = vmatprep.mubr.f32.mxu0 0.0
    %124 = vmatmul.mubr.f32.gmra.mrb[0].mxu0 %v30
    %v125 = vpop.f32.mrb[0].mxu0
    %v126 = vadd.f32 0.0, %v125
    %v127 = vpop.f32.mrb[0].mxu0
    %128 = vmatprep.mubr.f32.mxu0 0.0
    %129 = vmatmul.mubr.f32.gmra.mrb[0].mxu0 %v33
    %v130 = vpop.f32.mrb[0].mxu0
    %v131 = vadd.f32 0.0, %v130
    %v132 = vpop.f32.mrb[0].mxu0
    %133 = vmatprep.mubr.f32.mxu0 0.0
    %134 = vmatmul.mubr.f32.gmra.mrb[0].mxu0 %v36
    %v135 = vpop.f32.mrb[0].mxu0
    %v136 = vadd.f32 0.0, %v135
    %v137 = vpop.f32.mrb[0].mxu0
    %138 = vmatprep.mubr.f32.mxu0 0.0
    %139 = vmatmul.mubr.f32.gmra.mrb[0].mxu0 %v39
    %v140 = vpop.f32.mrb[0].mxu0
    %v141 = vadd.f32 0.0, %v140
    %v142 = vpop.f32.mrb[0].mxu0
    %143 = vmatprep.mubr.f32.mxu0 0.0
    %144 = vmatmul.mubr.f32.gmra.mrb[0].mxu0 %v42
    %v145 = vpop.f32.mrb[0].mxu0
    %v146 = vadd.f32 0.0, %v145
    %v147 = vpop.f32.mrb[0].mxu0
    %148 = vmatprep.mubr.f32.mxu0 0.0
    %149 = vmatmul.mubr.f32.gmra.mrb[0].mxu0 %v45
    %v150 = vpop.f32.mrb[0].mxu0
    %v151 = vadd.f32 0.0, %v150
    %v152 = vpop.f32.mrb[0].mxu0
    %153 = vmatprep.mubr.f32.mxu0 0.0
    %154 = vmatmul.mubr.f32.gmra.mrb[0].mxu0 %v48
    %v155 = vpop.f32.mrb[0].mxu0
    %v156 = vadd.f32 0.0, %v155
    %v157 = vpop.f32.mrb[0].mxu0
    %158 = vdwg.mxu0
    %v159 = vtanh.pop %v121
    %v160 = vtanh.pop %v126
    %v161 = vtanh.pop %v131
    %v162 = vtanh.pop %v136
    %v163 = vtanh.pop %v141
    %v164 = vtanh.pop %v146
    %v165 = vtanh.pop %v151
    %v166 = vtanh.pop %v156
    %v167 = vld [vmem:[%s2] sm:$0x3]
    %vm168 = vcmask 523264
    %v170 = vsel %vm168, %v167, 0
    %172 = vmatprep.subr.mxu0 0.0
    %173 = vmatpush1.msra.mxu0 %v159
    %174 = vmatprep.subr.mxu0 0.0
    %175 = vmatpush1.msra.mxu0 %v160
    %176 = vmatprep.subr.mxu0 0.0
    %177 = vmatpush1.msra.mxu0 %v161
    %178 = vmatprep.subr.mxu0 0.0
    %179 = vmatpush1.msra.mxu0 %v162
    %180 = vmatprep.subr.mxu0 0.0
    %181 = vmatpush1.msra.mxu0 %v163
    %182 = vmatprep.subr.mxu0 0.0
    %183 = vmatpush1.msra.mxu0 %v164
    %184 = vmatprep.subr.mxu0 0.0
    %185 = vmatpush1.msra.mxu0 %v165
    %186 = vmatprep.subr.mxu0 0.0
    %187 = vmatpush1.msra.mxu0 %v166
    %188 = vmatprep.subr.mxu0 0.0
    %189 = vmatpush1.msra.mxu0 0.0
    %190 = vmatprep.subr.mxu0 0.0
    %191 = vmatpush1.msra.mxu0 0.0
    %192 = vmatprep.subr.mxu0 0.0
    %193 = vmatpush1.msra.mxu0 0.0
    %194 = vmatprep.subr.mxu0 0.0
    %195 = vmatpush1.msra.mxu0 0.0
    %196 = vmatprep.subr.mxu0 0.0
    %197 = vmatpush1.msra.mxu0 0.0
    %198 = vmatprep.subr.mxu0 0.0
    %199 = vmatpush1.msra.mxu0 0.0
    %200 = vmatprep.subr.mxu0 0.0
    %201 = vmatpush1.msra.mxu0 0.0
    %202 = vmatprep.subr.mxu0 0.0
    %203 = vmatpush1.msra.mxu0 0.0
    %204 = vmatprep.subr.mxu0 0.0
    %205 = vmatpush1.msra.mxu0 0.0
    %206 = vmatprep.subr.mxu0 0.0
    %207 = vmatpush1.msra.mxu0 0.0
    %208 = vmatprep.subr.mxu0 0.0
    %209 = vmatpush1.msra.mxu0 0.0
    %210 = vmatprep.subr.mxu0 0.0
    %211 = vmatpush1.msra.mxu0 0.0
    %212 = vmatprep.subr.mxu0 0.0
    %213 = vmatpush1.msra.mxu0 0.0
    %214 = vmatprep.subr.mxu0 0.0
    %215 = vmatpush1.msra.mxu0 0.0
    %216 = vmatprep.subr.mxu0 0.0
    %217 = vmatpush1.msra.mxu0 0.0
    %218 = vmatprep.subr.mxu0 0.0
    %219 = vmatpush1.msra.mxu0 0.0
    %220 = vmatprep.subr.mxu0 0.0
    %221 = vmatpush1.msra.mxu0 0.0
    %222 = vmatprep.subr.mxu0 0.0
    %223 = vmatpush1.msra.mxu0 0.0
    %224 = vmatprep.subr.mxu0 0.0
    %225 = vmatpush1.msra.mxu0 0.0
    %226 = vmatprep.subr.mxu0 0.0
    %227 = vmatpush1.msra.mxu0 0.0
    %228 = vmatprep.subr.mxu0 0.0
    %229 = vmatpush1.msra.mxu0 0.0
    %230 = vmatprep.subr.mxu0 0.0
    %231 = vmatpush1.msra.mxu0 0.0
    %232 = vmatprep.subr.mxu0 0.0
    %233 = vmatpush1.msra.mxu0 0.0
    %234 = vmatprep.subr.mxu0 0.0
    %235 = vmatpush1.msra.mxu0 0.0
    %236 = vmatprep.mubr.f32.mxu0 0.0
    %237 = vmatmul.mubr.f32.gmra.mrb[0].mxu0 %v170
    %v238 = vpop.f32.mrb[0].mxu0
    %v239 = vadd.f32 %v16, %v238
    %v240 = vpop.f32.mrb[0].mxu0
    %241 = vdwg.mxu0
    %242 = vst [vmem:[#allocation2] sm:$0x3] %v239
    // Predicated region
    $region14: #{u_func_forward.1} parent=1 // pred_check
      _
    $region15: #{u_func_forward.1} parent=1 // pred_check_branch
      %244 = sbr.rel (0) target = $region17
    $region16: #{u_func_forward.1} parent=1 // pred_region
      %s246 = ssub.s32 32, 32
      %247 = vsyncadd [#allocation3], %s246
      %s249 = sshll.u32 [#allocation2], 4
      %s250 = int_to_ptr.vmem [resolvable:$true] %s249
      %252 = dma.vmem_to_hbm [thread:$0]  %s250, 32, %s3, [#allocation3]
    $region17: #{u_func_forward.1} parent=1 // pred_fallthru
      _
    // Predicated region
    $region18: #{u_func_forward.1} parent=1 // pred_check
      _
    $region19: #{u_func_forward.1} parent=1 // pred_check_branch
      %254 = sbr.rel (0) target = $region21
    $region20: #{u_func_forward.1} parent=1 // pred_region
      %255 = dma.done [#allocation3], 32
    $region21: #{u_func_forward.1} parent=1 // pred_fallthru
      _
    %256 = vsyncpa [#allocation3], 1

</llo_original>
